<compile_context>
chip_gen: v7x
topology: tpu7x:2x2x1
jax: 0.10.0
libtpu: 0.0.40
codegen_flags: <defaults>
</compile_context>

<pallas_src>
import functools
import math
from types import SimpleNamespace

import jax
import jax.numpy as jnp
from jax import lax
from jax.experimental import pallas as pl
from jax.experimental.pallas import tpu as pltpu


def _round_up(x, m):
    return ((x + m - 1) // m) * m


# ----------------------------------------------------------------------------
# Tiled lane-dense matmul kernel:  act( W(Cout,K) @ X(K,M) + bias[:,None] (+extra) )
# ----------------------------------------------------------------------------

def _apply_act(y, act):
    if act == 'relu':
        return jnp.maximum(y, 0.0)
    if act == 'sigmoid':
        return jax.nn.sigmoid(y)
    if act == 'tanh':
        return jnp.tanh(y)
    return y


def _mm_kernel(a_ref, b_ref, bias_ref, o_ref, acc_ref, *, act):
    @pl.when(pl.program_id(2) == 0)
    def _():
        acc_ref[...] = jnp.zeros_like(acc_ref)

    acc_ref[...] += jnp.dot(a_ref[...], b_ref[...],
                            preferred_element_type=jnp.float32)

    @pl.when(pl.program_id(2) == pl.num_programs(2) - 1)
    def _():
        o_ref[...] = _apply_act(acc_ref[...] + bias_ref[...], act)


def _mm_extra_kernel(a_ref, b_ref, bias_ref, e_ref, o_ref, acc_ref, *, act):
    @pl.when(pl.program_id(2) == 0)
    def _():
        acc_ref[...] = jnp.zeros_like(acc_ref)

    acc_ref[...] += jnp.dot(a_ref[...], b_ref[...],
                            preferred_element_type=jnp.float32)

    @pl.when(pl.program_id(2) == pl.num_programs(2) - 1)
    def _():
        o_ref[...] = _apply_act(acc_ref[...] + bias_ref[...] + e_ref[...], act)


def pallas_matmul_lane_dense(wm, xm, bias, extra=None, act=None):
    """act( (Cout,K) @ (K,M) + bias (+ extra) ), bf16 MXU operands, f32 accumulate.

    Output is lane-dense: last dim is M (padded to a multiple of 128)."""
    cout, k = wm.shape
    k2, m = xm.shape
    assert k == k2

    # tile sizes (multiples of 8/128, padded operands so blocks divide evenly)
    cp8 = _round_up(cout, 8)
    tm = cp8 if cp8 <= 256 else 128
    cp = _round_up(cout, tm)

    kp128 = _round_up(k, 128)
    tk = kp128 if kp128 <= 1024 else 512
    kp = _round_up(k, tk)

    mp128 = _round_up(m, 128)
    tn = mp128 if mp128 <= 512 else 512
    mp = _round_up(m, tn)

    a = jnp.pad(wm.astype(jnp.bfloat16), ((0, cp - cout), (0, kp - k)))
    b = jnp.pad(xm.astype(jnp.bfloat16), ((0, kp - k), (0, mp - m)))
    bb = jnp.pad(bias.astype(jnp.float32), (0, cp - cout)).reshape(cp, 1)

    grid = (cp // tm, mp // tn, kp // tk)
    in_specs = [
        pl.BlockSpec((tm, tk), lambda i, j, kk: (i, kk)),
        pl.BlockSpec((tk, tn), lambda i, j, kk: (kk, j)),
        pl.BlockSpec((tm, 1), lambda i, j, kk: (i, 0)),
    ]
    operands = [a, b, bb]
    if extra is not None:
        e = jnp.pad(extra.astype(jnp.float32), ((0, cp - cout), (0, mp - m)))
        in_specs.append(pl.BlockSpec((tm, tn), lambda i, j, kk: (i, j)))
        operands.append(e)
        kernel = functools.partial(_mm_extra_kernel, act=act)
    else:
        kernel = functools.partial(_mm_kernel, act=act)

    out = pl.pallas_call(
        kernel,
        out_shape=jax.ShapeDtypeStruct((cp, mp), jnp.float32),
        grid=grid,
        in_specs=in_specs,
        out_specs=pl.BlockSpec((tm, tn), lambda i, j, kk: (i, j)),
        scratch_shapes=[pltpu.VMEM((tm, tn), jnp.float32)],
        compiler_params=pltpu.CompilerParams(
            dimension_semantics=("parallel", "parallel", "arbitrary"),
            vmem_limit_bytes=32 * 1024 * 1024),
    )(*operands)
    return out[:cout, :m]


# ----------------------------------------------------------------------------
# Batched 1-D correlation kernel (TH rows of the image per grid step)
# ----------------------------------------------------------------------------

def _corr_kernel(f1_ref, f2_ref, o_ref, *, scale):
    # (TH, C, W) x (TH, C, W) -> (TH, W, W), contraction over C, batch over TH.
    o_ref[...] = jnp.einsum('bcw,bcv->bwv', f1_ref[...], f2_ref[...],
                            preferred_element_type=jnp.float32) * scale


def pallas_correlation_1d(fmap1, fmap2):
    """corr[n,h,w1,w2] = sum_c f1[n,c,h,w1]*f2[n,c,h,w2] / sqrt(C)."""
    N, C, H, W = fmap1.shape
    R = N * H
    TH = 8 if R >= 8 else R
    Rp = _round_up(R, TH)
    scale = 1.0 / math.sqrt(C)

    f1 = fmap1.transpose(0, 2, 1, 3).reshape(R, C, W).astype(jnp.bfloat16)
    f2 = fmap2.transpose(0, 2, 1, 3).reshape(R, C, W).astype(jnp.bfloat16)
    if Rp != R:
        f1 = jnp.pad(f1, ((0, Rp - R), (0, 0), (0, 0)))
        f2 = jnp.pad(f2, ((0, Rp - R), (0, 0), (0, 0)))

    corr = pl.pallas_call(
        functools.partial(_corr_kernel, scale=scale),
        out_shape=jax.ShapeDtypeStruct((Rp, W, W), jnp.float32),
        grid=(Rp // TH,),
        in_specs=[pl.BlockSpec((TH, C, W), lambda i: (i, 0, 0)),
                  pl.BlockSpec((TH, C, W), lambda i: (i, 0, 0))],
        out_specs=pl.BlockSpec((TH, W, W), lambda i: (i, 0, 0)),
        compiler_params=pltpu.CompilerParams(
            dimension_semantics=("parallel",),
            vmem_limit_bytes=32 * 1024 * 1024),
    )(f1, f2)
    return corr[:R].reshape(N, H, W, W)


# ----------------------------------------------------------------------------
# Lane-dense tiled element-wise kernels
# ----------------------------------------------------------------------------

def _ew_norm_kernel(x_ref, o_ref):
    o_ref[...] = x_ref[...] * (2.0 / 255.0) - 1.0


def _ew_tanh_kernel(x_ref, o_ref):
    o_ref[...] = jnp.tanh(x_ref[...])


def _ew_relu_kernel(x_ref, o_ref):
    o_ref[...] = jnp.maximum(x_ref[...], 0.0)


def _ew_mul_kernel(a_ref, b_ref, o_ref):
    o_ref[...] = a_ref[...] * b_ref[...]


def _ew_gru_out_kernel(h_ref, z_ref, q_ref, o_ref):
    z = z_ref[...]
    o_ref[...] = (1.0 - z) * h_ref[...] + z * q_ref[...]


_EW_LANE = 512
_EW_MAX_ROWS = 256


def _ew_apply(kernel, arrays):
    """Run an element-wise kernel on same-shape arrays as lane-dense (rows, 512) tiles."""
    shape = arrays[0].shape
    total = math.prod(shape)
    lane = _EW_LANE
    rows = -(-total // lane)
    if rows <= _EW_MAX_ROWS:
        tr = rows
        rows_p = rows
    else:
        tr = _EW_MAX_ROWS
        rows_p = _round_up(rows, tr)
    size_p = rows_p * lane

    flats = [jnp.pad(a.astype(jnp.float32).reshape(-1), (0, size_p - total))
             .reshape(rows_p, lane) for a in arrays]
    spec = pl.BlockSpec((tr, lane), lambda i: (i, 0))
    res = pl.pallas_call(
        kernel,
        out_shape=jax.ShapeDtypeStruct((rows_p, lane), jnp.float32),
        grid=(rows_p // tr,),
        in_specs=[spec] * len(flats),
        out_specs=spec,
        compiler_params=pltpu.CompilerParams(dimension_semantics=("parallel",)),
    )(*flats)
    return res.reshape(-1)[:total].reshape(shape)


# ----------------------------------------------------------------------------
# Conv (im2col glue in JAX, tiled lane-dense matmul in Pallas)
# ----------------------------------------------------------------------------

def _prep_conv(p):
    w = p['w']
    cout, cin, kh, kw = w.shape
    return {'wm': w.reshape(cout, cin * kh * kw).astype(jnp.bfloat16),
            'b': p['b'].astype(jnp.float32),
            'cout': cout, 'kh': kh, 'kw': kw}


def _prep_fused(ps):
    w = jnp.concatenate([p['w'] for p in ps], axis=0)
    b = jnp.concatenate([p['b'] for p in ps], axis=0)
    return _prep_conv({'w': w, 'b': b})


def prepare_params(params):
    """Reshape / bf16-cast / fuse the conv weights once (hoisted out of the iter loop)."""
    prep = {}
    for name in ('zqr', 'mc', 'mf', 'mm', 'gq', 'fh2', 'mh2'):
        prep[name] = _prep_conv(params[name])
    prep['gzr'] = _prep_fused([params['gz'], params['gr']])   # fused z/r gate conv
    prep['fm1'] = _prep_fused([params['fh1'], params['mh1']])  # fused flow/mask head conv1
    for enc in ('fnet', 'cnet'):
        prep[enc] = {k: _prep_conv(v) for k, v in params[enc].items()}
    return prep


def conv2d(x, pc, stride=1, padding=0, act=None, extra=None):
    n, c, h, w = x.shape
    kh, kw = pc['kh'], pc['kw']
    cout = pc['cout']
    if padding > 0:
        x = jnp.pad(x, ((0, 0), (0, 0), (padding, padding), (padding, padding)))
    ho = (h + 2 * padding - kh) // stride + 1
    wo = (w + 2 * padding - kw) // stride + 1
    cols = [x[:, :, i:i + stride * ho:stride, j:j + stride * wo:stride]
            for i in range(kh) for j in range(kw)]
    patches = jnp.stack(cols, axis=2)                               # (N,C,kh*kw,Ho,Wo)
    patches = patches.transpose(1, 2, 0, 3, 4).reshape(c * kh * kw, n * ho * wo)
    out = pallas_matmul_lane_dense(pc['wm'], patches, pc['b'], extra=extra, act=act)
    return out.reshape(cout, n, ho, wo).transpose(1, 0, 2, 3)


def encoder(x, pe):
    # downsample factor 2**n_downsample = 4
    h = conv2d(x, pe['c1'], stride=2, padding=1, act='relu')
    h = conv2d(h, pe['c2'], stride=2, padding=1, act='relu')
    h = conv2d(h, pe['c3'], stride=1, padding=1)
    return h


# ----------------------------------------------------------------------------
# Correlation pyramid / lookup
# ----------------------------------------------------------------------------

def build_corr_pyramid(fmap1, fmap2, num_levels):
    corr = pallas_correlation_1d(fmap1, fmap2)          # (N,H,W,W2)
    pyramid = [corr]
    for _ in range(num_levels - 1):
        last = pyramid[-1]
        w2 = last.shape[-1]
        pyramid.append(last.reshape(*last.shape[:-1], w2 // 2, 2).mean(-1))
    return pyramid


def _bilinear_sample_1d(corr, x):
    W2 = corr.shape[-1]
    x0 = jnp.floor(x)
    x1 = x0 + 1.0
    w1 = x - x0
    w0 = 1.0 - w1

    def gather(xi):
        idx = jnp.clip(xi, 0, W2 - 1).astype(jnp.int32)
        v = jnp.take_along_axis(corr, idx, axis=-1)
        valid = (xi >= 0) & (xi <= W2 - 1)
        return jnp.where(valid, v, 0.0)

    return w0 * gather(x0) + w1 * gather(x1)


def corr_lookup(pyramid, coords, radius):
    x = coords[:, 0]
    dx = jnp.arange(-radius, radius + 1, dtype=jnp.float32)
    outs = []
    for lvl, corr in enumerate(pyramid):
        xs = x[..., None] / (2.0 ** lvl) + dx
        outs.append(_bilinear_sample_1d(corr, xs))
    out = jnp.concatenate(outs, axis=-1)
    return out.transpose(0, 3, 1, 2).astype(jnp.float32)


# ----------------------------------------------------------------------------
# Flow utilities (exact QPDNet semantics)
# ----------------------------------------------------------------------------

def coords_grid(N, H, W):
    y, x = jnp.meshgrid(jnp.arange(H, dtype=jnp.float32),
                        jnp.arange(W, dtype=jnp.float32), indexing='ij')
    coords = jnp.stack([x, y], axis=0)
    return jnp.broadcast_to(coords[None], (N, 2, H, W))


def upsample_flow(flow, mask, factor):
    """[H/f, W/f, 2] -> [H, W, 2] convex combination (matches QPDNet.upsample_flow)."""
    N, D, H, W = flow.shape
    mask = mask.reshape(N, 1, 9, factor, factor, H, W)
    mask = jax.nn.softmax(mask, axis=2)
    fp = jnp.pad(factor * flow, ((0, 0), (0, 0), (1, 1), (1, 1)))
    patches = jnp.stack([fp[:, :, i:i + H, j:j + W]
                         for i in range(3) for j in range(3)], axis=2)  # (N,D,9,H,W)
    up = patches[:, :, :, None, None, :, :]
    up = jnp.sum(mask * up, axis=2)
    up = up.transpose(0, 1, 4, 2, 5, 3)
    return up.reshape(N, D, factor * H, factor * W)


# ----------------------------------------------------------------------------
# Update block (motion encoder + ConvGRU + flow / mask heads)
# ----------------------------------------------------------------------------

def update_block(prep, hd, net, extra_zr, extra_q, corr, flow):
    # motion encoder (simplified BasicMotionEncoder)
    mc = conv2d(corr, prep['mc'], padding=0, act='relu')
    mf = conv2d(flow, prep['mf'], padding=1, act='relu')
    m = conv2d(jnp.concatenate([mc, mf], axis=1), prep['mm'], padding=1, act='relu')
    x = jnp.concatenate([m, flow], axis=1)                      # motion features

    # ConvGRU: z/r gates fused into one matmul with context bias + sigmoid epilogue
    hx = jnp.concatenate([net, x], axis=1)
    zr = conv2d(hx, prep['gzr'], padding=1, act='sigmoid', extra=extra_zr)
    z = zr[:, :hd]
    r = zr[:, hd:]
    rh = _ew_apply(_ew_mul_kernel, [r, net])                    # r * h
    q = conv2d(jnp.concatenate([rh, x], axis=1), prep['gq'],
               padding=1, act='tanh', extra=extra_q)
    net = _ew_apply(_ew_gru_out_kernel, [net, z, q])            # (1-z)*h + z*q

    # flow head + mask head (first convs fused, shared `net` patches)
    fm = conv2d(net, prep['fm1'], padding=1, act='relu')
    fh = fm[:, :32]
    mh = fm[:, 32:]
    delta_flow = conv2d(fh, prep['fh2'], padding=1)
    up_mask = 0.25 * conv2d(mh, prep['mh2'], padding=0)
    return net, up_mask, delta_flow


# ----------------------------------------------------------------------------
# Full QPDNet forward
# ----------------------------------------------------------------------------

def qpdnet_forward(params, args, int_features, image1, image2, iters=12,
                   flow_init=None, test_mode=False):
    prep = prepare_params(params)
    N = image1.shape[0]
    hd = args.hidden_dims[0]
    factor = 2 ** args.n_downsample

    # image normalization: 2*(img/255) - 1
    img1 = _ew_apply(_ew_norm_kernel, [image1])
    img2 = _ew_apply(_ew_norm_kernel, [image2])

    # context network -> hidden (tanh) / context (relu, unused — matches reference)
    cnet_out = encoder(img1, prep['cnet'])
    net = _ew_apply(_ew_tanh_kernel, [cnet_out[:, :hd]])
    _ori_inp = _ew_apply(_ew_relu_kernel, [cnet_out[:, hd:]])   # computed but unused

    # feature network
    fmap1 = encoder(img1, prep['fnet'])
    fmap2 = jnp.stack([encoder(img2, prep['fnet'])], axis=1)    # torch.stack(fmap[1:], dim=1)

    # context_zqr_convs applied to int_features[::-1], split into 3 chunks
    inp_list = list(int_features[::-1])
    ctx = conv2d(inp_list[0], prep['zqr'], padding=1)
    cz, cr, cq = ctx[:, :hd], ctx[:, hd:2 * hd], ctx[:, 2 * hd:]

    h4, w4 = net.shape[2], net.shape[3]
    M4 = N * h4 * w4
    # constant across iterations: context terms in the matmul's lane-dense layout
    extra_zr = jnp.concatenate([cz, cr], axis=1).transpose(1, 0, 2, 3).reshape(2 * hd, M4)
    extra_q = cq.transpose(1, 0, 2, 3).reshape(hd, M4)

    # correlation pyramid (corr_implementation == 'reg')
    corr_pyramid = build_corr_pyramid(fmap1.astype(jnp.float32),
                                      fmap2[:, 0].astype(jnp.float32),
                                      args.corr_levels)

    coords0 = coords_grid(N, h4, w4)
    coords1 = coords_grid(N, h4, w4)
    if flow_init is not None:
        coords1 = coords1 + flow_init

    flow_predictions = []
    flow_up = None
    for itr in range(iters):
        corr = corr_lookup(corr_pyramid, coords1, args.corr_radius)
        flow = coords1 - coords0
        net, up_mask, delta_flow = update_block(prep, hd, net, extra_zr, extra_q,
                                                corr, flow)
        delta_flow = delta_flow.at[:, 1].set(0.0)               # delta_flow[:, 1] = 0.0
        coords1 = coords1 + delta_flow
        if test_mode and itr < iters - 1:
            continue
        flow_up = upsample_flow(coords1 - coords0, up_mask, factor)
        flow_up = flow_up[:, :1]
        flow_predictions.append(flow_up)

    if test_mode:
        return coords1 - coords0, flow_up
    return flow_predictions


# ----------------------------------------------------------------------------
# Deterministic parameter construction
# ----------------------------------------------------------------------------

def _conv_init(key, cout, cin, k):
    fan = cin * k * k
    w = jax.random.normal(key, (cout, cin, k, k), jnp.float32) / math.sqrt(fan)
    b = jnp.zeros((cout,), jnp.float32)
    return {'w': w, 'b': b}


def init_params(key, args):
    hd = args.hidden_dims[0]
    corr_ch = args.corr_levels * (2 * args.corr_radius + 1)
    factor = 2 ** args.n_downsample
    keys = iter(jax.random.split(key, 32))
    p = {}
    p['fnet'] = {'c1': _conv_init(next(keys), 32, 3, 3),
                 'c2': _conv_init(next(keys), 64, 32, 3),
                 'c3': _conv_init(next(keys), 256, 64, 3)}
    p['cnet'] = {'c1': _conv_init(next(keys), 32, 3, 3),
                 'c2': _conv_init(next(keys), 64, 32, 3),
                 'c3': _conv_init(next(keys), 2 * hd, 64, 3)}
    p['zqr'] = _conv_init(next(keys), 3 * hd, hd, 3)
    p['mc'] = _conv_init(next(keys), 32, corr_ch, 1)
    p['mf'] = _conv_init(next(keys), 16, 2, 3)
    p['mm'] = _conv_init(next(keys), 30, 48, 3)
    p['gz'] = _conv_init(next(keys), hd, hd + 32, 3)
    p['gr'] = _conv_init(next(keys), hd, hd + 32, 3)
    p['gq'] = _conv_init(next(keys), hd, hd + 32, 3)
    p['fh1'] = _conv_init(next(keys), 32, hd, 3)
    p['fh2'] = _conv_init(next(keys), 2, 32, 3)
    p['mh1'] = _conv_init(next(keys), 32, hd, 3)
    p['mh2'] = _conv_init(next(keys), 9 * factor * factor, 32, 1)
    return p


# ----------------------------------------------------------------------------
# Main
# ----------------------------------------------------------------------------

if __name__ == "__main__":
    args = SimpleNamespace(
        hidden_dims=[32], n_gru_layers=1, n_downsample=2,
        corr_radius=3, corr_levels=2, corr_implementation='reg',
        mixed_precision=False, CAPA=False, shared_backbone=False,
        input_image_num=2, slow_fast_gru=False, context_norm='batch')

    params = init_params(jax.random.PRNGKey(42), args)

    key = jax.random.PRNGKey(0)
    k1, k2, k3 = jax.random.split(key, 3)
    image1 = jax.random.uniform(k1, (1, 3, 32, 32), jnp.float32) * 255.0
    image2 = jax.random.uniform(k2, (1, 3, 32, 32), jnp.float32) * 255.0
    # int_features: external intermediate features at 1/4 resolution
    int_features = [jax.random.normal(k3, (1, 32, 8, 8), jnp.float32)]

    flow_predictions = qpdnet_forward(params, args, int_features,
                                      image1, image2, iters=2)
    for f in flow_predictions:
        jax.block_until_ready(f)

    assert len(flow_predictions) == 2
    assert flow_predictions[-1].shape == (1, 1, 32, 32)
    assert flow_predictions[-1].dtype == jnp.float32
    print("KERNEL_OK")
</pallas_src>

<mosaic_0001>
module attributes {stable_mosaic.version = 11 : i64} {
  func.func @_ew_norm_kernel(%arg0: i32, %arg1: memref<6x512xf32, #tpu.memory_space<vmem>>, %arg2: memref<6x512xf32, #tpu.memory_space<vmem>>) attributes {dimension_semantics = [#tpu.dimension_semantics<parallel>], iteration_bounds = array<i64: 1>, scalar_prefetch = 0 : i64, scratch_operands = 0 : i64, tpu.core_type = #tpu.core_type<tc>, window_params = [{transform_indices = @transform_0, window_bounds = array<i64: 6, 512>}, {transform_indices = @transform_1, window_bounds = array<i64: 6, 512>}]} {
    %c0 = arith.constant 0 : index
    %c0_0 = arith.constant 0 : index
    %0 = vector.load %arg1[%c0, %c0_0] : memref<6x512xf32, #tpu.memory_space<vmem>>, vector<6x512xf32>
    %cst = arith.constant 0.00784313772 : f32
    %1 = vector.broadcast %cst : f32 to vector<6x512xf32>
    %2 = arith.mulf %0, %1 : vector<6x512xf32>
    %cst_1 = arith.constant 1.000000e+00 : f32
    %3 = vector.broadcast %cst_1 : f32 to vector<6x512xf32>
    %4 = arith.subf %2, %3 : vector<6x512xf32>
    %c0_2 = arith.constant 0 : index
    %c0_3 = arith.constant 0 : index
    %5 = vector.load %arg2[%c0_2, %c0_3] : memref<6x512xf32, #tpu.memory_space<vmem>>, vector<6x512xf32>
    tpu.vector_store %arg2[%c0_2, %c0_3], %4 {strides = array<i32>} : memref<6x512xf32, #tpu.memory_space<vmem>>, vector<6x512xf32>,
    return
  }
  func.func @transform_0(%arg0: i32) -> (i32, i32) {
    %c0_i32 = arith.constant 0 : i32
    %c0_i32_0 = arith.constant 0 : i32
    return %arg0, %c0_i32 : i32, i32
  }
  func.func @transform_1(%arg0: i32) -> (i32, i32) {
    %c0_i32 = arith.constant 0 : i32
    %c0_i32_0 = arith.constant 0 : i32
    return %arg0, %c0_i32 : i32, i32
  }
}

</mosaic_0001>

<llo_original>
// kernel: tpu_custom_call.1
$region0: #{tpu_custom_call.1}
  #allocation0 [shape = 'u32[]', space=smem, size = 0x4, offset = 0x4, fixed_abs, tag = 'smem constant byte address 0x4 - core index']
  #allocation1 [shape = 'u32[144,128]{1,0:T(1,128)}', space=vmem, size = 0x12000, scoped, tag = 'internal scratch']
  %s0 = inlined_call_operand.hbm [shape: f32[6,512], index: 0, kind: input, shape index: {}]
  %s1 = inlined_call_operand.hbm [shape: f32[6,512], index: 1, kind: output, shape index: {}]
  %s2 = sld [smem:[#allocation0]]
  $region18: #{tpu_custom_call.1} parent=0
    _
  %s4 = ssub.s32 1, %s2
  %s5 = scalar_select 0, %s4, %s2
  $region1: #{tpu_custom_call.1} parent=0
    #allocation2 [shape = 'u8[16384]{0}', space=vmem, size = 0x4000, scoped, tag = 'input window, operand 0, single buffered']
    #allocation3 [shape = 's32[1]{0}', space=sflag, size = 0x4, scoped, tag = 'scoped memory for tpu_custom_call.1']
    #allocation4 [shape = 's32[1]{0}', space=sflag, size = 0x4, scoped, tag = 'scoped memory for tpu_custom_call.1']
    #allocation5 [shape = 'u8[16384]{0}', space=vmem, size = 0x4000, scoped, tag = 'output window, operand 0, single buffered']
    %6 = vsyncpa [#allocation3], 0
    %7 = vsyncpa [#allocation4], 0
    // Predicated region
    $region2: #{tpu_custom_call.1} parent=1 // pred_check
      _
    $region3: #{tpu_custom_call.1} parent=1 // pred_check_branch
      %9 = sbr.rel (0) target = $region5
    $region4: #{tpu_custom_call.1} parent=1 // pred_region
      %s11 = ssub.s32 512, 512
      %12 = vsyncadd [#allocation3], %s11
      %s14 = sshll.u32 [#allocation2], 4
      %s15 = int_to_ptr.vmem [resolvable:$true] %s14
      %17 = dma.hbm_to_vmem [thread:$0]  %s0, 512, %s15, [#allocation3]
    $region5: #{tpu_custom_call.1} parent=1 // pred_fallthru
      _
    // Predicated region
    $region6: #{tpu_custom_call.1} parent=1 // pred_check
      _
    $region7: #{tpu_custom_call.1} parent=1 // pred_check_branch
      %19 = sbr.rel (0) target = $region9
    $region8: #{tpu_custom_call.1} parent=1 // pred_region
      %20 = dma.done [#allocation3], 512
    $region9: #{tpu_custom_call.1} parent=1 // pred_fallthru
      _
    %v21 = vld [vmem:[#allocation2] sm:$0x3f]
    %v22 = vld [vmem:[#allocation2 + $0x8] sm:$0x3f]
    %v23 = vld [vmem:[#allocation2 + $0x10] sm:$0x3f]
    %v24 = vld [vmem:[#allocation2 + $0x18] sm:$0x3f]
    %v25 = vmul.f32 %v21, 0.007843138
    %v26 = vmul.f32 %v22, 0.007843138
    %v27 = vmul.f32 %v23, 0.007843138
    %v28 = vmul.f32 %v24, 0.007843138
    %v29 = vsub.f32 %v25, 1.0
    %v30 = vsub.f32 %v26, 1.0
    %v31 = vsub.f32 %v27, 1.0
    %v32 = vsub.f32 %v28, 1.0
    %33 = vst [vmem:[#allocation5] sm:$0x3f] %v29
    %34 = vst [vmem:[#allocation5 + $0x8] sm:$0x3f] %v30
    %35 = vst [vmem:[#allocation5 + $0x10] sm:$0x3f] %v31
    %36 = vst [vmem:[#allocation5 + $0x18] sm:$0x3f] %v32
    // Predicated region
    $region10: #{tpu_custom_call.1} parent=1 // pred_check
      _
    $region11: #{tpu_custom_call.1} parent=1 // pred_check_branch
      %38 = sbr.rel (0) target = $region13
    $region12: #{tpu_custom_call.1} parent=1 // pred_region
      %s40 = ssub.s32 512, 512
      %41 = vsyncadd [#allocation4], %s40
      %s43 = sshll.u32 [#allocation5], 4
      %s44 = int_to_ptr.vmem [resolvable:$true] %s43
      %46 = dma.vmem_to_hbm [thread:$0]  %s44, 512, %s1, [#allocation4]
    $region13: #{tpu_custom_call.1} parent=1 // pred_fallthru
      _
    // Predicated region
    $region14: #{tpu_custom_call.1} parent=1 // pred_check
      _
    $region15: #{tpu_custom_call.1} parent=1 // pred_check_branch
      %48 = sbr.rel (0) target = $region17
    $region16: #{tpu_custom_call.1} parent=1 // pred_region
      %49 = dma.done [#allocation4], 512
    $region17: #{tpu_custom_call.1} parent=1 // pred_fallthru
      _
    %50 = vsyncpa [#allocation3], 1
    %51 = vsyncpa [#allocation4], 1

</llo_original>
